<compile_context>
chip_gen: v5e
topology: v5e:2x2
jax: 0.10.0
libtpu: 0.0.40
codegen_flags: <defaults>
</compile_context>

<pallas_src>
import numpy as np
import jax
import jax.numpy as jnp
from jax.experimental import pallas as pl
from jax.experimental.pallas import tpu as pltpu


# ----------------------------- Pallas kernel --------------------------------
def fold_decoder_kernel(feat_ref, pts1_ref, wcode_ref, wslab_ref, out_ref):
    F = wcode_ref.shape[0]
    B = feat_ref.shape[0]
    M = pts1_ref.shape[0]

    feat = feat_ref[...]                          # (B, F)  codewords
    pts1 = pts1_ref[...]                          # (M, F)  points@w1a[F:] + b1a
    wcode = wcode_ref[...]                        # (F, 2F) [w1a[:F] | w2a[:F]]

    w1b   = wslab_ref[0 * F:1 * F, :]             # (F, F)
    wfuse = wslab_ref[1 * F:2 * F, :]             # (F, F)  w1c @ w2a[F:F+2]
    w2b   = wslab_ref[2 * F:3 * F, :]             # (F, F)
    w2c   = wslab_ref[3 * F:4 * F, :]             # (F, F)  cols 2: are zero
    bias  = wslab_ref[4 * F:4 * F + 8, :]         # (8, F)  bias rows
    b1b, b2a, b2b, b2c = (bias[0:1, :], bias[1:2, :], bias[2:3, :], bias[3:4, :])

    # -------- fused codeword matmul for both folding stages -----------------
    feat12 = jnp.dot(feat, wcode, preferred_element_type=jnp.float32)   # (B, 2F)
    feat1 = feat12[:, :F]                                               # (B, F)
    feat2 = feat12[:, F:] + b2a           # b2a already includes b1c @ w2a[F:F+2]

    # -------- folding1, layer 1: broadcast-add (no concat, no unroll) -------
    h = jnp.maximum(pts1[None, :, :] + feat1[:, None, :], 0.0)          # (B, M, F)
    h = h.reshape(B * M, F)

    # -------- folding1, layer 2 ----------------------------------------------
    h = jnp.maximum(
        jnp.dot(h, w1b, preferred_element_type=jnp.float32) + b1b, 0.0)  # (B*M, F)

    # -------- folding2, layer 1 (fold1 algebraically eliminated) ------------
    pre2 = jnp.dot(h, wfuse, preferred_element_type=jnp.float32)        # (B*M, F)
    h = jnp.maximum(pre2.reshape(B, M, F) + feat2[:, None, :], 0.0)     # (B, M, F)
    h = h.reshape(B * M, F)

    # -------- folding2, layer 2 ----------------------------------------------
    h = jnp.maximum(
        jnp.dot(h, w2b, preferred_element_type=jnp.float32) + b2b, 0.0)  # (B*M, F)

    # -------- folding2, layer 3 -> (B, M, 2) store ---------------------------
    out = jnp.dot(h, w2c, preferred_element_type=jnp.float32) + b2c      # (B*M, F)
    out_ref[...] = out.reshape(B, M, F)[:, :, :2]


# ------------------------- one-time parameter packing ------------------------
def pack_params(params, points_cl):
    """Fold the static grid / constant-weight work out of the kernel and pack
    the 12 tiny Conv1d params into 3 slabs (pts1, wcode, wslab)."""
    (w1a, b1a, w1b, b1b, w1c, b1c,
     w2a, b2a, w2b, b2b, w2c, b2c) = [jnp.asarray(p, jnp.float32) for p in params]
    F = w1b.shape[0]

    # point contribution of folding1 conv1, bias folded in        -> (M, F)
    pts1 = points_cl.astype(jnp.float32) @ w1a[F:F + 2, :] + b1a
    # fused codeword weights for folding1/folding2 conv1           -> (F, 2F)
    wcode = jnp.concatenate([w1a[:F, :], w2a[:F, :]], axis=1)
    # fold1 elimination: push w1c through folding2 conv1
    w_fuse = w1c @ w2a[F:F + 2, :]                                  # (F, F)
    b2a_eff = b2a + b1c @ w2a[F:F + 2, :]                           # (1, F)
    # final conv weight/bias zero-padded to F output columns
    w2c_pad = jnp.zeros((F, F), jnp.float32).at[:, :2].set(w2c)
    b2c_pad = jnp.zeros((1, F), jnp.float32).at[:, :2].set(b2c)
    # bias rows padded to 8 sublanes
    bias_rows = jnp.concatenate(
        [b1b, b2a_eff, b2b, b2c_pad, jnp.zeros((4, F), jnp.float32)], axis=0)
    # single weight+bias slab, static row offsets (multiples of 8) -> (4F+8, F)
    wslab = jnp.concatenate([w1b, w_fuse, w2b, w2c_pad, bias_rows], axis=0)
    return pts1, wcode, wslab


# ------------------------------ wrapper --------------------------------------
@jax.jit
def fold_decoder(x, pts1, wcode, wslab):
    """x: (B, 1, F) codeword (PyTorch input layout).  Packed params from
    pack_params().  Returns (B, M, 2) == PyTorch folding_result2.transpose(1,2)."""
    B, _, F = x.shape
    M = pts1.shape[0]
    feat = x.reshape(B, F).astype(jnp.float32)

    vmem = pl.BlockSpec(memory_space=pltpu.MemorySpace.VMEM)
    return pl.pallas_call(
        fold_decoder_kernel,
        out_shape=jax.ShapeDtypeStruct((B, M, 2), jnp.float32),
        in_specs=[vmem] * 4,
        out_specs=vmem,
    )(feat, pts1, wcode, wslab)


# -------------------------- param / grid builders ----------------------------
def init_params(key, feat_dims, point_dim=2):
    """Deterministic synthetic Conv1d(k=1) params, stored transposed as
    (C_in, C_out) so matmuls are (rows, C_in) @ (C_in, C_out)."""
    shapes = [
        (feat_dims + point_dim, feat_dims), (1, feat_dims),   # folding1 conv1
        (feat_dims, feat_dims), (1, feat_dims),               # folding1 conv2
        (feat_dims, 2), (1, 2),                               # folding1 conv3
        (feat_dims + 2, feat_dims), (1, feat_dims),           # folding2 conv1
        (feat_dims, feat_dims), (1, feat_dims),               # folding2 conv2
        (feat_dims, 2), (1, 2),                               # folding2 conv3
    ]
    keys = jax.random.split(key, len(shapes))
    return tuple(0.1 * jax.random.normal(k, s, dtype=jnp.float32)
                 for k, s in zip(keys, shapes))


def build_grid_diagonal(num_points):
    # PyTorch build_grid with args.shape == 'diagonal': (2, M) -> channels-last (M, 2)
    # TODO(synk): only the 'diagonal' grid is built; the other shapes ('1d',
    # 'circle', 'square', 'gaussian') are host-side numpy construction and
    # orthogonal to the kernel.
    xy = np.linspace(0.0, 1.0, num_points)
    pts = np.vstack((xy, xy)).astype(np.float32)   # (2, M)
    return jnp.asarray(pts.T)                      # (M, 2)


# ------------------------------ reference ------------------------------------
def reference(x, points_cl, params):
    """Faithful (concat-based) port of FoldDecoder.forward in channels-last."""
    B, _, F = x.shape
    M = points_cl.shape[0]
    (w1a, b1a, w1b, b1b, w1c, b1c,
     w2a, b2a, w2b, b2b, w2c, b2c) = params
    feat = jnp.broadcast_to(x.reshape(B, 1, F), (B, M, F))
    pts = jnp.broadcast_to(points_cl[None], (B, M, 2))

    def mlp3(inp, wa, ba, wb, bb, wc, bc):
        h = jnp.maximum(inp @ wa + ba, 0.0)
        h = jnp.maximum(h @ wb + bb, 0.0)
        return h @ wc + bc

    cat1 = jnp.concatenate([feat, pts], axis=-1)
    f1 = mlp3(cat1, w1a, b1a, w1b, b1b, w1c, b1c)
    cat2 = jnp.concatenate([feat, f1], axis=-1)
    return mlp3(cat2, w2a, b2a, w2b, b2b, w2c, b2c)


# --------------------------------- main ---------------------------------------
if __name__ == "__main__":
    B = 2            # batch
    FEAT_DIMS = 32   # args.feat_dims
    M = 64           # args.num_points
    # args.shape = 'diagonal'  => point_dim = 2

    key = jax.random.PRNGKey(0)
    kx, kp = jax.random.split(key)
    x = jax.random.normal(kx, (B, 1, FEAT_DIMS), dtype=jnp.float32)  # codeword
    points = build_grid_diagonal(M)                                  # (M, 2)
    params = init_params(kp, FEAT_DIMS, point_dim=2)

    # one-time packing (parameter/grid-only work, outside the kernel hot path)
    pts1, wcode, wslab = pack_params(params, points)

    out = jax.block_until_ready(fold_decoder(x, pts1, wcode, wslab))
    ref = jax.block_until_ready(reference(x, points, params))

    assert out.shape == (B, M, 2)
    np.testing.assert_allclose(np.asarray(out), np.asarray(ref),
                               rtol=1e-5, atol=1e-5)
    print("KERNEL_OK")
</pallas_src>

<mosaic_0001>
module attributes {stable_mosaic.version = 11 : i64} {
  func.func @fold_decoder_kernel(%arg0: memref<2x32xf32, #tpu.memory_space<vmem>>, %arg1: memref<64x32xf32, #tpu.memory_space<vmem>>, %arg2: memref<32x64xf32, #tpu.memory_space<vmem>>, %arg3: memref<136x32xf32, #tpu.memory_space<vmem>>, %arg4: memref<2x64x2xf32, #tpu.memory_space<vmem>>) attributes {dimension_semantics = [], scalar_prefetch = 0 : i64, scratch_operands = 0 : i64, tpu.core_type = #tpu.core_type<tc>} {
    %c0 = arith.constant 0 : index
    %c0_0 = arith.constant 0 : index
    %0 = vector.load %arg0[%c0, %c0_0] : memref<2x32xf32, #tpu.memory_space<vmem>>, vector<2x32xf32>
    %c0_1 = arith.constant 0 : index
    %c0_2 = arith.constant 0 : index
    %1 = vector.load %arg1[%c0_1, %c0_2] : memref<64x32xf32, #tpu.memory_space<vmem>>, vector<64x32xf32>
    %c0_3 = arith.constant 0 : index
    %c0_4 = arith.constant 0 : index
    %2 = vector.load %arg2[%c0_3, %c0_4] : memref<32x64xf32, #tpu.memory_space<vmem>>, vector<32x64xf32>
    %c0_5 = arith.constant 0 : index
    %c0_6 = arith.constant 0 : index
    %3 = vector.load %arg3[%c0_5, %c0_6] : memref<136x32xf32, #tpu.memory_space<vmem>>, vector<32x32xf32>
    %c32 = arith.constant 32 : index
    %c0_7 = arith.constant 0 : index
    %4 = vector.load %arg3[%c32, %c0_7] : memref<136x32xf32, #tpu.memory_space<vmem>>, vector<32x32xf32>
    %c64 = arith.constant 64 : index
    %c0_8 = arith.constant 0 : index
    %5 = vector.load %arg3[%c64, %c0_8] : memref<136x32xf32, #tpu.memory_space<vmem>>, vector<32x32xf32>
    %c96 = arith.constant 96 : index
    %c0_9 = arith.constant 0 : index
    %6 = vector.load %arg3[%c96, %c0_9] : memref<136x32xf32, #tpu.memory_space<vmem>>, vector<32x32xf32>
    %c128 = arith.constant 128 : index
    %c0_10 = arith.constant 0 : index
    %7 = vector.load %arg3[%c128, %c0_10] : memref<136x32xf32, #tpu.memory_space<vmem>>, vector<8x32xf32>
    %8 = vector.extract_strided_slice %7 {offsets = [0, 0], sizes = [1, 32], strides = [1, 1]} : vector<8x32xf32> to vector<1x32xf32>
    %9 = vector.extract_strided_slice %7 {offsets = [1, 0], sizes = [1, 32], strides = [1, 1]} : vector<8x32xf32> to vector<1x32xf32>
    %10 = vector.extract_strided_slice %7 {offsets = [2, 0], sizes = [1, 32], strides = [1, 1]} : vector<8x32xf32> to vector<1x32xf32>
    %11 = vector.extract_strided_slice %7 {offsets = [3, 0], sizes = [1, 32], strides = [1, 1]} : vector<8x32xf32> to vector<1x32xf32>
    %cst = arith.constant dense<0.000000e+00> : vector<2x64xf32>
    %12 = tpu.matmul %0, %2, %cst {dimension_numbers = #tpu.dot_dimension_numbers<[1], [0], [0], [1], [0, 0, 1, 1], [], []>} : vector<2x32xf32>, vector<32x64xf32>, vector<2x64xf32> -> vector<2x64xf32>
    %13 = vector.extract_strided_slice %12 {offsets = [0, 0], sizes = [2, 32], strides = [1, 1]} : vector<2x64xf32> to vector<2x32xf32>
    %14 = vector.extract_strided_slice %12 {offsets = [0, 32], sizes = [2, 32], strides = [1, 1]} : vector<2x64xf32> to vector<2x32xf32>
    %15 = vector.broadcast %9 : vector<1x32xf32> to vector<2x32xf32>
    %16 = arith.addf %14, %15 : vector<2x32xf32>
    %17 = vector.shape_cast %1 : vector<64x32xf32> to vector<1x64x32xf32>
    %18 = vector.shape_cast %13 : vector<2x32xf32> to vector<2x1x32xf32>
    %19 = vector.broadcast %17 : vector<1x64x32xf32> to vector<2x64x32xf32>
    %20 = vector.broadcast %18 : vector<2x1x32xf32> to vector<2x64x32xf32>
    %21 = arith.addf %19, %20 : vector<2x64x32xf32>
    %cst_11 = arith.constant 0.000000e+00 : f32
    %22 = vector.broadcast %cst_11 : f32 to vector<2x64x32xf32>
    %23 = arith.maximumf %21, %22 : vector<2x64x32xf32>
    %24 = vector.shape_cast %23 : vector<2x64x32xf32> to vector<128x32xf32>
    %cst_12 = arith.constant dense<0.000000e+00> : vector<128x32xf32>
    %25 = tpu.matmul %24, %3, %cst_12 {dimension_numbers = #tpu.dot_dimension_numbers<[1], [0], [0], [1], [0, 0, 1, 1], [], []>} : vector<128x32xf32>, vector<32x32xf32>, vector<128x32xf32> -> vector<128x32xf32>
    %26 = vector.broadcast %8 : vector<1x32xf32> to vector<128x32xf32>
    %27 = arith.addf %25, %26 : vector<128x32xf32>
    %cst_13 = arith.constant 0.000000e+00 : f32
    %28 = vector.broadcast %cst_13 : f32 to vector<128x32xf32>
    %29 = arith.maximumf %27, %28 : vector<128x32xf32>
    %cst_14 = arith.constant dense<0.000000e+00> : vector<128x32xf32>
    %30 = tpu.matmul %29, %4, %cst_14 {dimension_numbers = #tpu.dot_dimension_numbers<[1], [0], [0], [1], [0, 0, 1, 1], [], []>} : vector<128x32xf32>, vector<32x32xf32>, vector<128x32xf32> -> vector<128x32xf32>
    %31 = vector.shape_cast %30 : vector<128x32xf32> to vector<2x64x32xf32>
    %32 = vector.shape_cast %16 : vector<2x32xf32> to vector<2x1x32xf32>
    %33 = vector.broadcast %32 : vector<2x1x32xf32> to vector<2x64x32xf32>
    %34 = arith.addf %31, %33 : vector<2x64x32xf32>
    %cst_15 = arith.constant 0.000000e+00 : f32
    %35 = vector.broadcast %cst_15 : f32 to vector<2x64x32xf32>
    %36 = arith.maximumf %34, %35 : vector<2x64x32xf32>
    %37 = vector.shape_cast %36 : vector<2x64x32xf32> to vector<128x32xf32>
    %cst_16 = arith.constant dense<0.000000e+00> : vector<128x32xf32>
    %38 = tpu.matmul %37, %5, %cst_16 {dimension_numbers = #tpu.dot_dimension_numbers<[1], [0], [0], [1], [0, 0, 1, 1], [], []>} : vector<128x32xf32>, vector<32x32xf32>, vector<128x32xf32> -> vector<128x32xf32>
    %39 = vector.broadcast %10 : vector<1x32xf32> to vector<128x32xf32>
    %40 = arith.addf %38, %39 : vector<128x32xf32>
    %cst_17 = arith.constant 0.000000e+00 : f32
    %41 = vector.broadcast %cst_17 : f32 to vector<128x32xf32>
    %42 = arith.maximumf %40, %41 : vector<128x32xf32>
    %cst_18 = arith.constant dense<0.000000e+00> : vector<128x32xf32>
    %43 = tpu.matmul %42, %6, %cst_18 {dimension_numbers = #tpu.dot_dimension_numbers<[1], [0], [0], [1], [0, 0, 1, 1], [], []>} : vector<128x32xf32>, vector<32x32xf32>, vector<128x32xf32> -> vector<128x32xf32>
    %44 = vector.broadcast %11 : vector<1x32xf32> to vector<128x32xf32>
    %45 = arith.addf %43, %44 : vector<128x32xf32>
    %46 = vector.shape_cast %45 : vector<128x32xf32> to vector<2x64x32xf32>
    %47 = vector.extract_strided_slice %46 {offsets = [0, 0, 0], sizes = [2, 64, 2], strides = [1, 1, 1]} : vector<2x64x32xf32> to vector<2x64x2xf32>
    %c0_19 = arith.constant 0 : index
    %c0_20 = arith.constant 0 : index
    %c0_21 = arith.constant 0 : index
    %48 = vector.load %arg4[%c0_19, %c0_20, %c0_21] : memref<2x64x2xf32, #tpu.memory_space<vmem>>, vector<2x64x2xf32>
    tpu.vector_store %arg4[%c0_19, %c0_20, %c0_21], %47 {strides = array<i32>} : memref<2x64x2xf32, #tpu.memory_space<vmem>>, vector<2x64x2xf32>,
    return
  }
}

</mosaic_0001>

<llo_original>
// kernel: fold_decoder.1
$region0: #{fold_decoder.1}
  #allocation0 [shape = 'u32[]', space=smem, size = 0x4, offset = 0x4, fixed_abs, tag = 'smem constant byte address 0x4 - core index']
  #allocation1 [shape = 'u32[72,128]{1,0:T(1,128)}', space=vmem, size = 0x9000, scoped, tag = 'internal scratch']
  %s0 = inlined_call_operand.vmem [shape: f32[2,32], index: 0, kind: input, shape index: {}]
  %s1 = inlined_call_operand.vmem [shape: f32[64,32], index: 1, kind: input, shape index: {}]
  %s2 = inlined_call_operand.vmem [shape: f32[32,64], index: 2, kind: input, shape index: {}]
  %s3 = inlined_call_operand.vmem [shape: f32[136,32], index: 3, kind: input, shape index: {}]
  %s4 = inlined_call_operand.vmem [shape: f32[2,64,2], index: 4, kind: output, shape index: {}]
  %s5 = sld [smem:[#allocation0]]
  $region26: #{fold_decoder.1} parent=0
    _
  %s7 = ssub.s32 1, %s5
  %s8 = scalar_select 0, %s7, %s5
  // Predicated region
  $region2: #{fold_decoder.1} parent=0 // pred_check
    _
  $region3: #{fold_decoder.1} parent=0 // pred_check_branch
    %10 = sbr.rel (0) target = $region5
  $region4: #{fold_decoder.1} parent=0 // pred_region
    _
  $region5: #{fold_decoder.1} parent=0 // pred_fallthru
    _
  // Predicated region
  $region6: #{fold_decoder.1} parent=0 // pred_check
    _
  $region7: #{fold_decoder.1} parent=0 // pred_check_branch
    %12 = sbr.rel (0) target = $region9
  $region8: #{fold_decoder.1} parent=0 // pred_region
    _
  $region9: #{fold_decoder.1} parent=0 // pred_fallthru
    _
  // Predicated region
  $region10: #{fold_decoder.1} parent=0 // pred_check
    _
  $region11: #{fold_decoder.1} parent=0 // pred_check_branch
    %14 = sbr.rel (0) target = $region13
  $region12: #{fold_decoder.1} parent=0 // pred_region
    _
  $region13: #{fold_decoder.1} parent=0 // pred_fallthru
    _
  // Predicated region
  $region14: #{fold_decoder.1} parent=0 // pred_check
    _
  $region15: #{fold_decoder.1} parent=0 // pred_check_branch
    %16 = sbr.rel (0) target = $region17
  $region16: #{fold_decoder.1} parent=0 // pred_region
    _
  $region17: #{fold_decoder.1} parent=0 // pred_fallthru
    _
  %v17 = vld [vmem:[%s0] sm:$0x3]
  %v18 = vld [vmem:[%s1] sm:$0xff]
  %v19 = vld [vmem:[%s1 + $0x8] sm:$0xff]
  %v20 = vld [vmem:[%s1 + $0x10] sm:$0xff]
  %v21 = vld [vmem:[%s1 + $0x18] sm:$0xff]
  %v22 = vld [vmem:[%s1 + $0x20] sm:$0xff]
  %v23 = vld [vmem:[%s1 + $0x28] sm:$0xff]
  %v24 = vld [vmem:[%s1 + $0x30] sm:$0xff]
  %v25 = vld [vmem:[%s1 + $0x38] sm:$0xff]
  %v26 = vld [vmem:[%s2] sm:$0xff]
  %v27 = vld [vmem:[%s2 + $0x8] sm:$0xff]
  %v28 = vld [vmem:[%s2 + $0x10] sm:$0xff]
  %v29 = vld [vmem:[%s2 + $0x18] sm:$0xff]
  %v30 = vld [vmem:[%s3] sm:$0xff]
  %v31 = vld [vmem:[%s3 + $0x8] sm:$0xff]
  %v32 = vld [vmem:[%s3 + $0x10] sm:$0xff]
  %v33 = vld [vmem:[%s3 + $0x18] sm:$0xff]
  %v34 = vld [vmem:[%s3 + $0x20] sm:$0xff]
  %v35 = vld [vmem:[%s3 + $0x28] sm:$0xff]
  %v36 = vld [vmem:[%s3 + $0x30] sm:$0xff]
  %v37 = vld [vmem:[%s3 + $0x38] sm:$0xff]
  %v38 = vld [vmem:[%s3 + $0x40] sm:$0xff]
  %v39 = vld [vmem:[%s3 + $0x48] sm:$0xff]
  %v40 = vld [vmem:[%s3 + $0x50] sm:$0xff]
  %v41 = vld [vmem:[%s3 + $0x58] sm:$0xff]
  %v42 = vld [vmem:[%s3 + $0x60] sm:$0xff]
  %v43 = vld [vmem:[%s3 + $0x68] sm:$0xff]
  %v44 = vld [vmem:[%s3 + $0x70] sm:$0xff]
  %v45 = vld [vmem:[%s3 + $0x78] sm:$0xff]
  %v46 = vld [vmem:[%s3 + $0x80] sm:$0xff]
  %vm47 = vcmask 261120
  %v49 = vsel %vm47, %v17, 0
  %51 = vmatpush.msra.mxu0 0.0
  %52 = vmatpush.msra.mxu0 0.0
  %53 = vmatpush.msra.mxu0 0.0
  %54 = vmatpush.msra.mxu0 0.0
  %55 = vmatpush.msra.mxu0 0.0
  %56 = vmatpush.msra.mxu0 0.0
  %57 = vmatpush.msra.mxu0 0.0
  %58 = vmatpush.msra.mxu0 0.0
  %59 = vmatpush.msra.mxu0 0.0
  %60 = vmatpush.msra.mxu0 0.0
  %61 = vmatpush.msra.mxu0 0.0
  %62 = vmatpush.msra.mxu0 0.0
  %63 = vmatpush.msra.mxu0 %v29
  %64 = vmatpush.msra.mxu0 %v28
  %65 = vmatpush.msra.mxu0 %v27
  %66 = vmatpush.msra.mxu0 %v26
  %67 = vmatmul.f32.gmra.mxu0 %v49
  %v68 = vpop.f32.mrf.mxu0
  %v69 = vadd.f32 0.0, %v68
  %70 = vdwg.mxu0
  %v71 = vperm.slane %v46, 1
  %73 = vrot.lane.b32.xlu0 %v71, 32
  %v74 = vpop.permute.xlu0 %73
  %v76 = vadd.f32 %v69, %v74
  %v78 = vrot.slane %v69, 1
  %v79 = vperm.slane %v69, 0
  %v80 = vperm.slane %v78, 0
  %v83 = vadd.f32 %v18, %v79
  %v84 = vadd.f32 %v19, %v79
  %v85 = vadd.f32 %v20, %v79
  %v86 = vadd.f32 %v21, %v79
  %v87 = vadd.f32 %v22, %v79
  %v88 = vadd.f32 %v23, %v79
  %v89 = vadd.f32 %v24, %v79
  %v90 = vadd.f32 %v25, %v79
  %v91 = vadd.f32 %v18, %v80
  %v92 = vadd.f32 %v19, %v80
  %v93 = vadd.f32 %v20, %v80
  %v94 = vadd.f32 %v21, %v80
  %v95 = vadd.f32 %v22, %v80
  %v96 = vadd.f32 %v23, %v80
  %v97 = vadd.f32 %v24, %v80
  %v98 = vadd.f32 %v25, %v80
  %v99 = vmax.f32 %v83, 0.0
  %v100 = vmax.f32 %v84, 0.0
  %v101 = vmax.f32 %v85, 0.0
  %v102 = vmax.f32 %v86, 0.0
  %v103 = vmax.f32 %v87, 0.0
  %v104 = vmax.f32 %v88, 0.0
  %v105 = vmax.f32 %v89, 0.0
  %v106 = vmax.f32 %v90, 0.0
  %v107 = vmax.f32 %v91, 0.0
  %v108 = vmax.f32 %v92, 0.0
  %v109 = vmax.f32 %v93, 0.0
  %v110 = vmax.f32 %v94, 0.0
  %v111 = vmax.f32 %v95, 0.0
  %v112 = vmax.f32 %v96, 0.0
  %v113 = vmax.f32 %v97, 0.0
  %v114 = vmax.f32 %v98, 0.0
  %v115 = vperm.slane %v46, 0
  %v117 = vsel %vm47, %v99, 0
  %v120 = vsel %vm47, %v100, 0
  %v123 = vsel %vm47, %v101, 0
  %v126 = vsel %vm47, %v102, 0
  %v129 = vsel %vm47, %v103, 0
  %v132 = vsel %vm47, %v104, 0
  %v135 = vsel %vm47, %v105, 0
  %v138 = vsel %vm47, %v106, 0
  %v141 = vsel %vm47, %v107, 0
  %v144 = vsel %vm47, %v108, 0
  %v147 = vsel %vm47, %v109, 0
  %v150 = vsel %vm47, %v110, 0
  %v153 = vsel %vm47, %v111, 0
  %v156 = vsel %vm47, %v112, 0
  %v159 = vsel %vm47, %v113, 0
  %v162 = vsel %vm47, %v114, 0
  %164 = vmatpush.msra.mxu0 0.0
  %165 = vmatpush.msra.mxu0 0.0
  %166 = vmatpush.msra.mxu0 0.0
  %167 = vmatpush.msra.mxu0 0.0
  %168 = vmatpush.msra.mxu0 0.0
  %169 = vmatpush.msra.mxu0 0.0
  %170 = vmatpush.msra.mxu0 0.0
  %171 = vmatpush.msra.mxu0 0.0
  %172 = vmatpush.msra.mxu0 0.0
  %173 = vmatpush.msra.mxu0 0.0
  %174 = vmatpush.msra.mxu0 0.0
  %175 = vmatpush.msra.mxu0 0.0
  %176 = vmatpush.msra.mxu0 %v33
  %177 = vmatpush.msra.mxu0 %v32
  %178 = vmatpush.msra.mxu0 %v31
  %179 = vmatpush.msra.mxu0 %v30
  %180 = vmatmul.f32.gmra.mxu0 %v117
  %v181 = vpop.f32.mrf.mxu0
  %v182 = vadd.f32 %v115, %v181
  %183 = vmatmul.f32.gmra.mxu0 %v120
  %v184 = vpop.f32.mrf.mxu0
  %v185 = vadd.f32 %v115, %v184
  %186 = vmatmul.f32.gmra.mxu0 %v123
  %v187 = vpop.f32.mrf.mxu0
  %v188 = vadd.f32 %v115, %v187
  %189 = vmatmul.f32.gmra.mxu0 %v126
  %v190 = vpop.f32.mrf.mxu0
  %v191 = vadd.f32 %v115, %v190
  %192 = vmatmul.f32.gmra.mxu0 %v129
  %v193 = vpop.f32.mrf.mxu0
  %v194 = vadd.f32 %v115, %v193
  %195 = vmatmul.f32.gmra.mxu0 %v132
  %v196 = vpop.f32.mrf.mxu0
  %v197 = vadd.f32 %v115, %v196
  %198 = vmatmul.f32.gmra.mxu0 %v135
  %v199 = vpop.f32.mrf.mxu0
  %v200 = vadd.f32 %v115, %v199
  %201 = vmatmul.f32.gmra.mxu0 %v138
  %v202 = vpop.f32.mrf.mxu0
  %v203 = vadd.f32 %v115, %v202
  %204 = vmatmul.f32.gmra.mxu0 %v141
  %v205 = vpop.f32.mrf.mxu0
  %v206 = vadd.f32 %v115, %v205
  %207 = vmatmul.f32.gmra.mxu0 %v144
  %v208 = vpop.f32.mrf.mxu0
  %v209 = vadd.f32 %v115, %v208
  %210 = vmatmul.f32.gmra.mxu0 %v147
  %v211 = vpop.f32.mrf.mxu0
  %v212 = vadd.f32 %v115, %v211
  %213 = vmatmul.f32.gmra.mxu0 %v150
  %v214 = vpop.f32.mrf.mxu0
  %v215 = vadd.f32 %v115, %v214
  %216 = vmatmul.f32.gmra.mxu0 %v153
  %v217 = vpop.f32.mrf.mxu0
  %v218 = vadd.f32 %v115, %v217
  %219 = vmatmul.f32.gmra.mxu0 %v156
  %v220 = vpop.f32.mrf.mxu0
  %v221 = vadd.f32 %v115, %v220
  %222 = vmatmul.f32.gmra.mxu0 %v159
  %v223 = vpop.f32.mrf.mxu0
  %v224 = vadd.f32 %v115, %v223
  %225 = vmatmul.f32.gmra.mxu0 %v162
  %v226 = vpop.f32.mrf.mxu0
  %v227 = vadd.f32 %v115, %v226
  %228 = vdwg.mxu0
  %v229 = vmax.f32 %v182, 0.0
  %v230 = vmax.f32 %v185, 0.0
  %v231 = vmax.f32 %v188, 0.0
  %v232 = vmax.f32 %v191, 0.0
  %v233 = vmax.f32 %v194, 0.0
  %v234 = vmax.f32 %v197, 0.0
  %v235 = vmax.f32 %v200, 0.0
  %v236 = vmax.f32 %v203, 0.0
  %v237 = vmax.f32 %v206, 0.0
  %v238 = vmax.f32 %v209, 0.0
  %v239 = vmax.f32 %v212, 0.0
  %v240 = vmax.f32 %v215, 0.0
  %v241 = vmax.f32 %v218, 0.0
  %v242 = vmax.f32 %v221, 0.0
  %v243 = vmax.f32 %v224, 0.0
  %v244 = vmax.f32 %v227, 0.0
  %v246 = vsel %vm47, %v229, 0
  %v249 = vsel %vm47, %v230, 0
  %v252 = vsel %vm47, %v231, 0
  %v255 = vsel %vm47, %v232, 0
  %v258 = vsel %vm47, %v233, 0
  %v261 = vsel %vm47, %v234, 0
  %v264 = vsel %vm47, %v235, 0
  %v267 = vsel %vm47, %v236, 0
  %v270 = vsel %vm47, %v237, 0
  %v273 = vsel %vm47, %v238, 0
  %v276 = vsel %vm47, %v239, 0
  %v279 = vsel %vm47, %v240, 0
  %v282 = vsel %vm47, %v241, 0
  %v285 = vsel %vm47, %v242, 0
  %v288 = vsel %vm47, %v243, 0
  %v291 = vsel %vm47, %v244, 0
  %293 = vmatpush.msra.mxu0 0.0
  %294 = vmatpush.msra.mxu0 0.0
  %295 = vmatpush.msra.mxu0 0.0
  %296 = vmatpush.msra.mxu0 0.0
  %297 = vmatpush.msra.mxu0 0.0
  %298 = vmatpush.msra.mxu0 0.0
  %299 = vmatpush.msra.mxu0 0.0
  %300 = vmatpush.msra.mxu0 0.0
  %301 = vmatpush.msra.mxu0 0.0
  %302 = vmatpush.msra.mxu0 0.0
  %303 = vmatpush.msra.mxu0 0.0
  %304 = vmatpush.msra.mxu0 0.0
  %305 = vmatpush.msra.mxu0 %v37
  %306 = vmatpush.msra.mxu0 %v36
  %307 = vmatpush.msra.mxu0 %v35
  %308 = vmatpush.msra.mxu0 %v34
  %309 = vmatmul.f32.gmra.mxu0 %v246
  %v310 = vpop.f32.mrf.mxu0
  %v311 = vadd.f32 0.0, %v310
  %312 = vmatmul.f32.gmra.mxu0 %v249
  %v313 = vpop.f32.mrf.mxu0
  %v314 = vadd.f32 0.0, %v313
  %315 = vmatmul.f32.gmra.mxu0 %v252
  %v316 = vpop.f32.mrf.mxu0
  %v317 = vadd.f32 0.0, %v316
  %318 = vmatmul.f32.gmra.mxu0 %v255
  %v319 = vpop.f32.mrf.mxu0
  %v320 = vadd.f32 0.0, %v319
  %321 = vmatmul.f32.gmra.mxu0 %v258
  %v322 = vpop.f32.mrf.mxu0
  %v323 = vadd.f32 0.0, %v322
  %324 = vmatmul.f32.gmra.mxu0 %v261
  %v325 = vpop.f32.mrf.mxu0
  %v326 = vadd.f32 0.0, %v325
  %327 = vmatmul.f32.gmra.mxu0 %v264
  %v328 = vpop.f32.mrf.mxu0
  %v329 = vadd.f32 0.0, %v328
  %330 = vmatmul.f32.gmra.mxu0 %v267
  %v331 = vpop.f32.mrf.mxu0
  %v332 = vadd.f32 0.0, %v331
  %333 = vmatmul.f32.gmra.mxu0 %v270
  %v334 = vpop.f32.mrf.mxu0
  %v335 = vadd.f32 0.0, %v334
  %336 = vmatmul.f32.gmra.mxu0 %v273
  %v337 = vpop.f32.mrf.mxu0
  %v338 = vadd.f32 0.0, %v337
  %339 = vmatmul.f32.gmra.mxu0 %v276
  %v340 = vpop.f32.mrf.mxu0
  %v341 = vadd.f32 0.0, %v340
  %342 = vmatmul.f32.gmra.mxu0 %v279
  %v343 = vpop.f32.mrf.mxu0
  %v344 = vadd.f32 0.0, %v343
  %345 = vmatmul.f32.gmra.mxu0 %v282
  %v346 = vpop.f32.mrf.mxu0
  %v347 = vadd.f32 0.0, %v346
  %348 = vmatmul.f32.gmra.mxu0 %v285
  %v349 = vpop.f32.mrf.mxu0
  %v350 = vadd.f32 0.0, %v349
  %351 = vmatmul.f32.gmra.mxu0 %v288
  %v352 = vpop.f32.mrf.mxu0
  %v353 = vadd.f32 0.0, %v352
  %354 = vmatmul.f32.gmra.mxu0 %v291
  %v355 = vpop.f32.mrf.mxu0
  %v356 = vadd.f32 0.0, %v355
  %357 = vdwg.mxu0
  %v359 = vrot.slane %v76, 1
  %v360 = vperm.slane %v76, 0
  %v361 = vperm.slane %v359, 0
  %362 = vrot.lane.b32.xlu0 %v360, 96
  %v363 = vpop.permute.xlu0 %362
  %364 = vrot.lane.b32.xlu0 %v361, 96
  %v365 = vpop.permute.xlu0 %364
  %v368 = vadd.f32 %v311, %v363
  %v369 = vadd.f32 %v314, %v363
  %v370 = vadd.f32 %v317, %v363
  %v371 = vadd.f32 %v320, %v363
  %v372 = vadd.f32 %v323, %v363
  %v373 = vadd.f32 %v326, %v363
  %v374 = vadd.f32 %v329, %v363
  %v375 = vadd.f32 %v332, %v363
  %v376 = vadd.f32 %v335, %v365
  %v377 = vadd.f32 %v338, %v365
  %v378 = vadd.f32 %v341, %v365
  %v379 = vadd.f32 %v344, %v365
  %v380 = vadd.f32 %v347, %v365
  %v381 = vadd.f32 %v350, %v365
  %v382 = vadd.f32 %v353, %v365
  %v383 = vadd.f32 %v356, %v365
  %v384 = vmax.f32 %v368, 0.0
  %v385 = vmax.f32 %v369, 0.0
  %v386 = vmax.f32 %v370, 0.0
  %v387 = vmax.f32 %v371, 0.0
  %v388 = vmax.f32 %v372, 0.0
  %v389 = vmax.f32 %v373, 0.0
  %v390 = vmax.f32 %v374, 0.0
  %v391 = vmax.f32 %v375, 0.0
  %v392 = vmax.f32 %v376, 0.0
  %v393 = vmax.f32 %v377, 0.0
  %v394 = vmax.f32 %v378, 0.0
  %v395 = vmax.f32 %v379, 0.0
  %v396 = vmax.f32 %v380, 0.0
  %v397 = vmax.f32 %v381, 0.0
  %v398 = vmax.f32 %v382, 0.0
  %v399 = vmax.f32 %v383, 0.0
  %v400 = vperm.slane %v46, 2
  %v402 = vsel %vm47, %v384, 0
  %v405 = vsel %vm47, %v385, 0
  %v408 = vsel %vm47, %v386, 0
  %v411 = vsel %vm47, %v387, 0
  %v414 = vsel %vm47, %v388, 0
  %v417 = vsel %vm47, %v389, 0
  %v420 = vsel %vm47, %v390, 0
  %v423 = vsel %vm47, %v391, 0
  %v426 = vsel %vm47, %v392, 0
  %v429 = vsel %vm47, %v393, 0
  %v432 = vsel %vm47, %v394, 0
  %v435 = vsel %vm47, %v395, 0
  %v438 = vsel %vm47, %v396, 0
  %v441 = vsel %vm47, %v397, 0
  %v444 = vsel %vm47, %v398, 0
  %v447 = vsel %vm47, %v399, 0
  %449 = vmatpush.msra.mxu0 0.0
  %450 = vmatpush.msra.mxu0 0.0
  %451 = vmatpush.msra.mxu0 0.0
  %452 = vmatpush.msra.mxu0 0.0
  %453 = vmatpush.msra.mxu0 0.0
  %454 = vmatpush.msra.mxu0 0.0
  %455 = vmatpush.msra.mxu0 0.0
  %456 = vmatpush.msra.mxu0 0.0
  %457 = vmatpush.msra.mxu0 0.0
  %458 = vmatpush.msra.mxu0 0.0
  %459 = vmatpush.msra.mxu0 0.0
  %460 = vmatpush.msra.mxu0 0.0
  %461 = vmatpush.msra.mxu0 %v41
  %462 = vmatpush.msra.mxu0 %v40
  %463 = vmatpush.msra.mxu0 %v39
  %464 = vmatpush.msra.mxu0 %v38
  %465 = vmatmul.f32.gmra.mxu0 %v402
  %v466 = vpop.f32.mrf.mxu0
  %v467 = vadd.f32 %v400, %v466
  %468 = vmatmul.f32.gmra.mxu0 %v405
  %v469 = vpop.f32.mrf.mxu0
  %v470 = vadd.f32 %v400, %v469
  %471 = vmatmul.f32.gmra.mxu0 %v408
  %v472 = vpop.f32.mrf.mxu0
  %v473 = vadd.f32 %v400, %v472
  %474 = vmatmul.f32.gmra.mxu0 %v411
  %v475 = vpop.f32.mrf.mxu0
  %v476 = vadd.f32 %v400, %v475
  %477 = vmatmul.f32.gmra.mxu0 %v414
  %v478 = vpop.f32.mrf.mxu0
  %v479 = vadd.f32 %v400, %v478
  %480 = vmatmul.f32.gmra.mxu0 %v417
  %v481 = vpop.f32.mrf.mxu0
  %v482 = vadd.f32 %v400, %v481
  %483 = vmatmul.f32.gmra.mxu0 %v420
  %v484 = vpop.f32.mrf.mxu0
  %v485 = vadd.f32 %v400, %v484
  %486 = vmatmul.f32.gmra.mxu0 %v423
  %v487 = vpop.f32.mrf.mxu0
  %v488 = vadd.f32 %v400, %v487
  %489 = vmatmul.f32.gmra.mxu0 %v426
  %v490 = vpop.f32.mrf.mxu0
  %v491 = vadd.f32 %v400, %v490
  %492 = vmatmul.f32.gmra.mxu0 %v429
  %v493 = vpop.f32.mrf.mxu0
  %v494 = vadd.f32 %v400, %v493
  %495 = vmatmul.f32.gmra.mxu0 %v432
  %v496 = vpop.f32.mrf.mxu0
  %v497 = vadd.f32 %v400, %v496
  %498 = vmatmul.f32.gmra.mxu0 %v435
  %v499 = vpop.f32.mrf.mxu0
  %v500 = vadd.f32 %v400, %v499
  %501 = vmatmul.f32.gmra.mxu0 %v438
  %v502 = vpop.f32.mrf.mxu0
  %v503 = vadd.f32 %v400, %v502
  %504 = vmatmul.f32.gmra.mxu0 %v441
  %v505 = vpop.f32.mrf.mxu0
  %v506 = vadd.f32 %v400, %v505
  %507 = vmatmul.f32.gmra.mxu0 %v444
  %v508 = vpop.f32.mrf.mxu0
  %v509 = vadd.f32 %v400, %v508
  %510 = vmatmul.f32.gmra.mxu0 %v447
  %v511 = vpop.f32.mrf.mxu0
  %v512 = vadd.f32 %v400, %v511
  %513 = vdwg.mxu0
  %v514 = vmax.f32 %v467, 0.0
  %v515 = vmax.f32 %v470, 0.0
  %v516 = vmax.f32 %v473, 0.0
  %v517 = vmax.f32 %v476, 0.0
  %v518 = vmax.f32 %v479, 0.0
  %v519 = vmax.f32 %v482, 0.0
  %v520 = vmax.f32 %v485, 0.0
  %v521 = vmax.f32 %v488, 0.0
  %v522 = vmax.f32 %v491, 0.0
  %v523 = vmax.f32 %v494, 0.0
  %v524 = vmax.f32 %v497, 0.0
  %v525 = vmax.f32 %v500, 0.0
  %v526 = vmax.f32 %v503, 0.0
  %v527 = vmax.f32 %v506, 0.0
  %v528 = vmax.f32 %v509, 0.0
  %v529 = vmax.f32 %v512, 0.0
  %v530 = vperm.slane %v46, 3
  %v532 = vsel %vm47, %v514, 0
  %v535 = vsel %vm47, %v515, 0
  %v538 = vsel %vm47, %v516, 0
  %v541 = vsel %vm47, %v517, 0
  %v544 = vsel %vm47, %v518, 0
  %v547 = vsel %vm47, %v519, 0
  %v550 = vsel %vm47, %v520, 0
  %v553 = vsel %vm47, %v521, 0
  %v556 = vsel %vm47, %v522, 0
  %v559 = vsel %vm47, %v523, 0
  %v562 = vsel %vm47, %v524, 0
  %v565 = vsel %vm47, %v525, 0
  %v568 = vsel %vm47, %v526, 0
  %v571 = vsel %vm47, %v527, 0
  %v574 = vsel %vm47, %v528, 0
  %v577 = vsel %vm47, %v529, 0
  %579 = vmatpush.msra.mxu0 0.0
  %580 = vmatpush.msra.mxu0 0.0
  %581 = vmatpush.msra.mxu0 0.0
  %582 = vmatpush.msra.mxu0 0.0
  %583 = vmatpush.msra.mxu0 0.0
  %584 = vmatpush.msra.mxu0 0.0
  %585 = vmatpush.msra.mxu0 0.0
  %586 = vmatpush.msra.mxu0 0.0
  %587 = vmatpush.msra.mxu0 0.0
  %588 = vmatpush.msra.mxu0 0.0
  %589 = vmatpush.msra.mxu0 0.0
  %590 = vmatpush.msra.mxu0 0.0
  %591 = vmatpush.msra.mxu0 %v45
  %592 = vmatpush.msra.mxu0 %v44
  %593 = vmatpush.msra.mxu0 %v43
  %594 = vmatpush.msra.mxu0 %v42
  %595 = vmatmul.f32.gmra.mxu0 %v532
  %v596 = vpop.f32.mrf.mxu0
  %v597 = vadd.f32 %v530, %v596
  %598 = vmatmul.f32.gmra.mxu0 %v535
  %v599 = vpop.f32.mrf.mxu0
  %v600 = vadd.f32 %v530, %v599
  %601 = vmatmul.f32.gmra.mxu0 %v538
  %v602 = vpop.f32.mrf.mxu0
  %v603 = vadd.f32 %v530, %v602
  %604 = vmatmul.f32.gmra.mxu0 %v541
  %v605 = vpop.f32.mrf.mxu0
  %v606 = vadd.f32 %v530, %v605
  %607 = vmatmul.f32.gmra.mxu0 %v544
  %v608 = vpop.f32.mrf.mxu0
  %v609 = vadd.f32 %v530, %v608
  %610 = vmatmul.f32.gmra.mxu0 %v547
  %v611 = vpop.f32.mrf.mxu0
  %v612 = vadd.f32 %v530, %v611
  %613 = vmatmul.f32.gmra.mxu0 %v550
  %v614 = vpop.f32.mrf.mxu0
  %v615 = vadd.f32 %v530, %v614
  %616 = vmatmul.f32.gmra.mxu0 %v553
  %v617 = vpop.f32.mrf.mxu0
  %v618 = vadd.f32 %v530, %v617
  %619 = vmatmul.f32.gmra.mxu0 %v556
  %v620 = vpop.f32.mrf.mxu0
  %v621 = vadd.f32 %v530, %v620
  %622 = vmatmul.f32.gmra.mxu0 %v559
  %v623 = vpop.f32.mrf.mxu0
  %v624 = vadd.f32 %v530, %v623
  %625 = vmatmul.f32.gmra.mxu0 %v562
  %v626 = vpop.f32.mrf.mxu0
  %v627 = vadd.f32 %v530, %v626
  %628 = vmatmul.f32.gmra.mxu0 %v565
  %v629 = vpop.f32.mrf.mxu0
  %v630 = vadd.f32 %v530, %v629
  %631 = vmatmul.f32.gmra.mxu0 %v568
  %v632 = vpop.f32.mrf.mxu0
  %v633 = vadd.f32 %v530, %v632
  %634 = vmatmul.f32.gmra.mxu0 %v571
  %v635 = vpop.f32.mrf.mxu0
  %v636 = vadd.f32 %v530, %v635
  %637 = vmatmul.f32.gmra.mxu0 %v574
  %v638 = vpop.f32.mrf.mxu0
  %v639 = vadd.f32 %v530, %v638
  %640 = vmatmul.f32.gmra.mxu0 %v577
  %v641 = vpop.f32.mrf.mxu0
  %v642 = vadd.f32 %v530, %v641
  %643 = vdwg.mxu0
  %vm644 = vcmask 15360
  %645 = vst.msk [vmem:[%s4] sm:$0xff] %vm644, %v597
  %646 = vst.msk [vmem:[%s4 + $0x8] sm:$0xff] %vm644, %v600
  %647 = vst.msk [vmem:[%s4 + $0x10] sm:$0xff] %vm644, %v603
  %648 = vst.msk [vmem:[%s4 + $0x18] sm:$0xff] %vm644, %v606
  %649 = vst.msk [vmem:[%s4 + $0x20] sm:$0xff] %vm644, %v609
  %650 = vst.msk [vmem:[%s4 + $0x28] sm:$0xff] %vm644, %v612
  %651 = vst.msk [vmem:[%s4 + $0x30] sm:$0xff] %vm644, %v615
  %652 = vst.msk [vmem:[%s4 + $0x38] sm:$0xff] %vm644, %v618
  %653 = vst.msk [vmem:[%s4 + $0x40] sm:$0xff] %vm644, %v621
  %654 = vst.msk [vmem:[%s4 + $0x48] sm:$0xff] %vm644, %v624
  %655 = vst.msk [vmem:[%s4 + $0x50] sm:$0xff] %vm644, %v627
  %656 = vst.msk [vmem:[%s4 + $0x58] sm:$0xff] %vm644, %v630
  %657 = vst.msk [vmem:[%s4 + $0x60] sm:$0xff] %vm644, %v633
  %658 = vst.msk [vmem:[%s4 + $0x68] sm:$0xff] %vm644, %v636
  %659 = vst.msk [vmem:[%s4 + $0x70] sm:$0xff] %vm644, %v639
  %660 = vst.msk [vmem:[%s4 + $0x78] sm:$0xff] %vm644, %v642
  // Predicated region
  $region18: #{fold_decoder.1} parent=0 // pred_check
    _
  $region19: #{fold_decoder.1} parent=0 // pred_check_branch
    %662 = sbr.rel (0) target = $region21
  $region20: #{fold_decoder.1} parent=0 // pred_region
    _
  $region21: #{fold_decoder.1} parent=0 // pred_fallthru
    _
  // Predicated region
  $region22: #{fold_decoder.1} parent=0 // pred_check
    _
  $region23: #{fold_decoder.1} parent=0 // pred_check_branch
    %664 = sbr.rel (0) target = $region25
  $region24: #{fold_decoder.1} parent=0 // pred_region
    _
  $region25: #{fold_decoder.1} parent=0 // pred_fallthru
    _

</llo_original>
